<compile_context>
chip_gen: v5e
topology: v5e:2x2
jax: 0.10.0
libtpu: 0.0.40
codegen_flags: <defaults>
</compile_context>

<pallas_src>
import functools

import jax
import jax.numpy as jnp
from jax.experimental import pallas as pl
from jax.experimental.pallas import tpu as pltpu

_LANE = 128  # TPU vreg lane width


def _round_up(n, m):
    return ((n + m - 1) // m) * m


def qnetwork_kernel(x_ref, w1_ref, b1_ref, w2_ref, b2_ref, w3_ref, b3_ref, o_ref):
    # fc1 + ReLU: MXU dot in the streamed dtype (bf16 or f32), f32 accumulate.
    h1 = jnp.dot(x_ref[...], w1_ref[...], preferred_element_type=jnp.float32)
    h1 = jnp.maximum(h1 + b1_ref[...], 0.0)
    # fc2 + ReLU
    h2 = jnp.dot(h1.astype(w2_ref.dtype), w2_ref[...],
                 preferred_element_type=jnp.float32)
    h2 = jnp.maximum(h2 + b2_ref[...], 0.0)
    # fc3 (raw Q-values, lane-padded to 128 outputs -> unmasked stores)
    q = jnp.dot(h2.astype(w3_ref.dtype), w3_ref[...],
                preferred_element_type=jnp.float32)
    o_ref[...] = (q + b3_ref[...]).astype(o_ref.dtype)


@functools.partial(jax.jit, static_argnames=("block_b", "use_bf16", "force_pallas"))
def qnetwork_forward(x, params, *, block_b=512, use_bf16=True, force_pallas=False):
    """x: (B, state_size) float32; params: dict of transposed weights/biases."""
    B, state_size = x.shape
    w1, b1 = params["w1"], params["b1"]
    w2, b2 = params["w2"], params["b2"]
    w3, b3 = params["w3"], params["b3"]
    hidden = w1.shape[1]
    action_size = w3.shape[1]

    # Tiny single-state inference path: launch/grid overhead >> compute.
    if B <= 8 and not force_pallas:
        h1 = jnp.maximum(x @ w1 + b1, 0.0)
        h2 = jnp.maximum(h1 @ w2 + b2, 0.0)
        return h2 @ w3 + b3

    # --- lane-dense padding of feature dims (hidden 64 -> 128, actions -> 128)
    h_pad = _round_up(hidden, _LANE)
    a_pad = _round_up(action_size, _LANE)
    w1p = jnp.pad(w1, ((0, 0), (0, h_pad - hidden)))
    b1p = jnp.pad(b1, ((0, 0), (0, h_pad - hidden)))
    w2p = jnp.pad(w2, ((0, h_pad - hidden), (0, h_pad - hidden)))
    b2p = jnp.pad(b2, ((0, 0), (0, h_pad - hidden)))
    w3p = jnp.pad(w3, ((0, h_pad - hidden), (0, a_pad - action_size)))
    b3p = jnp.pad(b3, ((0, 0), (0, a_pad - action_size)))

    # --- streamed dtype: bf16 halves HBM bytes for x (the roofline term);
    #     biases stay f32 and are added to the f32 accumulator.
    stream_dtype = jnp.bfloat16 if use_bf16 else jnp.float32
    xs = x.astype(stream_dtype)
    w1p = w1p.astype(stream_dtype)
    w2p = w2p.astype(stream_dtype)
    w3p = w3p.astype(stream_dtype)

    # --- batch tiling: tile a multiple of the sublane packing (16 for bf16,
    #     8 for f32); pad B up to a whole number of tiles (tail rows sliced off).
    row_align = 16 if use_bf16 else 8
    tb = max(row_align, min(block_b, _round_up(B, row_align)))
    b_pad = _round_up(B, tb)
    if b_pad != B:
        xs = jnp.pad(xs, ((0, b_pad - B), (0, 0)))
    grid = (b_pad // tb,)

    def resident(shape):
        # Same block index every grid step -> stays VMEM-resident, no re-DMA.
        return pl.BlockSpec(shape, lambda i: (0, 0))

    out = pl.pallas_call(
        qnetwork_kernel,
        out_shape=jax.ShapeDtypeStruct((b_pad, a_pad), jnp.float32),
        grid_spec=pltpu.PrefetchScalarGridSpec(
            num_scalar_prefetch=0,
            grid=grid,
            in_specs=[
                pl.BlockSpec((tb, state_size), lambda i: (i, 0)),  # x (streamed)
                resident((state_size, h_pad)),                     # w1
                resident((1, h_pad)),                              # b1 (f32)
                resident((h_pad, h_pad)),                          # w2
                resident((1, h_pad)),                              # b2 (f32)
                resident((h_pad, a_pad)),                          # w3
                resident((1, a_pad)),                              # b3 (f32)
            ],
            out_specs=pl.BlockSpec((tb, a_pad), lambda i: (i, 0)),
        ),
        compiler_params=pltpu.CompilerParams(
            dimension_semantics=("parallel",),  # megacore sharding on v7x
        ),
    )(xs, w1p, b1p, w2p, b2p, w3p, b3p)

    return out[:B, :action_size]


def init_qnetwork_params(key, state_size, action_size, hidden=(64, 64)):
    """Deterministic init mirroring PyTorch nn.Linear default:
    U(-1/sqrt(fan_in), 1/sqrt(fan_in)) for weight and bias.
    Weights stored transposed: (in_features, out_features)."""
    dims = [state_size, hidden[0], hidden[1], action_size]
    params = {}
    for i in range(3):
        fan_in, fan_out = dims[i], dims[i + 1]
        key, kw, kb = jax.random.split(key, 3)
        bound = 1.0 / jnp.sqrt(jnp.float32(fan_in))
        params[f"w{i+1}"] = jax.random.uniform(
            kw, (fan_in, fan_out), jnp.float32, -bound, bound)
        # bias kept as (1, fan_out) so in-kernel broadcast is row-wise
        params[f"b{i+1}"] = jax.random.uniform(
            kb, (1, fan_out), jnp.float32, -bound, bound)
    return params


if __name__ == "__main__":
    state_size = 8
    action_size = 4
    batch = 50   # not a multiple of the tile -> exercises tail padding

    key = jax.random.PRNGKey(0)
    key, k_x = jax.random.split(key)
    params = init_qnetwork_params(key, state_size, action_size)
    x = jax.random.normal(k_x, (batch, state_size), dtype=jnp.float32)

    # Pure-JAX reference (same math, f32).
    h1 = jnp.maximum(x @ params["w1"] + params["b1"], 0.0)
    h2 = jnp.maximum(h1 @ params["w2"] + params["b2"], 0.0)
    ref = h2 @ params["w3"] + params["b3"]

    # f32 kernel path: small tile so the 50-row batch runs a multi-step grid.
    q_f32 = qnetwork_forward(x, params, block_b=16, use_bf16=False)
    jax.block_until_ready(q_f32)
    assert q_f32.shape == (batch, action_size)
    assert jnp.allclose(q_f32, ref, atol=1e-5, rtol=1e-5)

    # bf16-streamed kernel path (the v6e/v7x default): looser tolerance.
    q_bf16 = qnetwork_forward(x, params, block_b=16, use_bf16=True)
    jax.block_until_ready(q_bf16)
    assert q_bf16.shape == (batch, action_size)
    assert jnp.allclose(q_bf16, ref, atol=2e-2, rtol=2e-2)

    print("KERNEL_OK")
</pallas_src>

<mosaic_0001>
module attributes {stable_mosaic.version = 11 : i64} {
  func.func @qnetwork_kernel(%arg0: i32, %arg1: memref<16x8xf32, #tpu.memory_space<vmem>>, %arg2: memref<8x128xf32, #tpu.memory_space<vmem>>, %arg3: memref<1x128xf32, #tpu.memory_space<vmem>>, %arg4: memref<128x128xf32, #tpu.memory_space<vmem>>, %arg5: memref<1x128xf32, #tpu.memory_space<vmem>>, %arg6: memref<128x128xf32, #tpu.memory_space<vmem>>, %arg7: memref<1x128xf32, #tpu.memory_space<vmem>>, %arg8: memref<16x128xf32, #tpu.memory_space<vmem>>) attributes {dimension_semantics = [#tpu.dimension_semantics<parallel>], iteration_bounds = array<i64: 4>, scalar_prefetch = 0 : i64, scratch_operands = 0 : i64, tpu.core_type = #tpu.core_type<tc>, window_params = [{transform_indices = @transform_0, window_bounds = array<i64: 16, 8>}, {pipeline_mode = #tpu.pipeline_mode<synchronous>, transform_indices = @transform_1, window_bounds = array<i64: 8, 128>}, {pipeline_mode = #tpu.pipeline_mode<synchronous>, transform_indices = @transform_2, window_bounds = array<i64: 1, 128>}, {pipeline_mode = #tpu.pipeline_mode<synchronous>, transform_indices = @transform_3, window_bounds = array<i64: 128, 128>}, {pipeline_mode = #tpu.pipeline_mode<synchronous>, transform_indices = @transform_4, window_bounds = array<i64: 1, 128>}, {pipeline_mode = #tpu.pipeline_mode<synchronous>, transform_indices = @transform_5, window_bounds = array<i64: 128, 128>}, {pipeline_mode = #tpu.pipeline_mode<synchronous>, transform_indices = @transform_6, window_bounds = array<i64: 1, 128>}, {transform_indices = @transform_7, window_bounds = array<i64: 16, 128>}]} {
    %c0 = arith.constant 0 : index
    %c0_0 = arith.constant 0 : index
    %0 = vector.load %arg1[%c0, %c0_0] : memref<16x8xf32, #tpu.memory_space<vmem>>, vector<16x8xf32>
    %c0_1 = arith.constant 0 : index
    %c0_2 = arith.constant 0 : index
    %1 = vector.load %arg2[%c0_1, %c0_2] : memref<8x128xf32, #tpu.memory_space<vmem>>, vector<8x128xf32>
    %cst = arith.constant dense<0.000000e+00> : vector<16x128xf32>
    %2 = tpu.matmul %0, %1, %cst {dimension_numbers = #tpu.dot_dimension_numbers<[1], [0], [0], [1], [0, 0, 1, 1], [], []>} : vector<16x8xf32>, vector<8x128xf32>, vector<16x128xf32> -> vector<16x128xf32>
    %c0_3 = arith.constant 0 : index
    %c0_4 = arith.constant 0 : index
    %3 = vector.load %arg3[%c0_3, %c0_4] : memref<1x128xf32, #tpu.memory_space<vmem>>, vector<1x128xf32>
    %4 = vector.broadcast %3 : vector<1x128xf32> to vector<16x128xf32>
    %5 = arith.addf %2, %4 : vector<16x128xf32>
    %cst_5 = arith.constant 0.000000e+00 : f32
    %6 = vector.broadcast %cst_5 : f32 to vector<16x128xf32>
    %7 = arith.maximumf %5, %6 : vector<16x128xf32>
    %c0_6 = arith.constant 0 : index
    %c0_7 = arith.constant 0 : index
    %8 = vector.load %arg4[%c0_6, %c0_7] : memref<128x128xf32, #tpu.memory_space<vmem>>, vector<128x128xf32>
    %cst_8 = arith.constant dense<0.000000e+00> : vector<16x128xf32>
    %9 = tpu.matmul %7, %8, %cst_8 {dimension_numbers = #tpu.dot_dimension_numbers<[1], [0], [0], [1], [0, 0, 1, 1], [], []>} : vector<16x128xf32>, vector<128x128xf32>, vector<16x128xf32> -> vector<16x128xf32>
    %c0_9 = arith.constant 0 : index
    %c0_10 = arith.constant 0 : index
    %10 = vector.load %arg5[%c0_9, %c0_10] : memref<1x128xf32, #tpu.memory_space<vmem>>, vector<1x128xf32>
    %11 = vector.broadcast %10 : vector<1x128xf32> to vector<16x128xf32>
    %12 = arith.addf %9, %11 : vector<16x128xf32>
    %cst_11 = arith.constant 0.000000e+00 : f32
    %13 = vector.broadcast %cst_11 : f32 to vector<16x128xf32>
    %14 = arith.maximumf %12, %13 : vector<16x128xf32>
    %c0_12 = arith.constant 0 : index
    %c0_13 = arith.constant 0 : index
    %15 = vector.load %arg6[%c0_12, %c0_13] : memref<128x128xf32, #tpu.memory_space<vmem>>, vector<128x128xf32>
    %cst_14 = arith.constant dense<0.000000e+00> : vector<16x128xf32>
    %16 = tpu.matmul %14, %15, %cst_14 {dimension_numbers = #tpu.dot_dimension_numbers<[1], [0], [0], [1], [0, 0, 1, 1], [], []>} : vector<16x128xf32>, vector<128x128xf32>, vector<16x128xf32> -> vector<16x128xf32>
    %c0_15 = arith.constant 0 : index
    %c0_16 = arith.constant 0 : index
    %17 = vector.load %arg7[%c0_15, %c0_16] : memref<1x128xf32, #tpu.memory_space<vmem>>, vector<1x128xf32>
    %18 = vector.broadcast %17 : vector<1x128xf32> to vector<16x128xf32>
    %19 = arith.addf %16, %18 : vector<16x128xf32>
    %c0_17 = arith.constant 0 : index
    %c0_18 = arith.constant 0 : index
    %20 = vector.load %arg8[%c0_17, %c0_18] : memref<16x128xf32, #tpu.memory_space<vmem>>, vector<16x128xf32>
    tpu.vector_store %arg8[%c0_17, %c0_18], %19 {strides = array<i32>} : memref<16x128xf32, #tpu.memory_space<vmem>>, vector<16x128xf32>,
    return
  }
  func.func @transform_0(%arg0: i32) -> (i32, i32) {
    %c0_i32 = arith.constant 0 : i32
    %c0_i32_0 = arith.constant 0 : i32
    return %arg0, %c0_i32 : i32, i32
  }
  func.func @transform_1(%arg0: i32) -> (i32, i32) {
    %c0_i32 = arith.constant 0 : i32
    %c0_i32_0 = arith.constant 0 : i32
    %c0_i32_1 = arith.constant 0 : i32
    return %c0_i32, %c0_i32_0 : i32, i32
  }
  func.func @transform_2(%arg0: i32) -> (i32, i32) {
    %c0_i32 = arith.constant 0 : i32
    %c0_i32_0 = arith.constant 0 : i32
    %c0_i32_1 = arith.constant 0 : i32
    return %c0_i32, %c0_i32_0 : i32, i32
  }
  func.func @transform_3(%arg0: i32) -> (i32, i32) {
    %c0_i32 = arith.constant 0 : i32
    %c0_i32_0 = arith.constant 0 : i32
    %c0_i32_1 = arith.constant 0 : i32
    return %c0_i32, %c0_i32_0 : i32, i32
  }
  func.func @transform_4(%arg0: i32) -> (i32, i32) {
    %c0_i32 = arith.constant 0 : i32
    %c0_i32_0 = arith.constant 0 : i32
    %c0_i32_1 = arith.constant 0 : i32
    return %c0_i32, %c0_i32_0 : i32, i32
  }
  func.func @transform_5(%arg0: i32) -> (i32, i32) {
    %c0_i32 = arith.constant 0 : i32
    %c0_i32_0 = arith.constant 0 : i32
    %c0_i32_1 = arith.constant 0 : i32
    return %c0_i32, %c0_i32_0 : i32, i32
  }
  func.func @transform_6(%arg0: i32) -> (i32, i32) {
    %c0_i32 = arith.constant 0 : i32
    %c0_i32_0 = arith.constant 0 : i32
    %c0_i32_1 = arith.constant 0 : i32
    return %c0_i32, %c0_i32_0 : i32, i32
  }
  func.func @transform_7(%arg0: i32) -> (i32, i32) {
    %c0_i32 = arith.constant 0 : i32
    %c0_i32_0 = arith.constant 0 : i32
    return %arg0, %c0_i32 : i32, i32
  }
}

</mosaic_0001>

<llo_original>
// kernel: qnetwork_forward.1
$region0: #{qnetwork_forward.1}
  #allocation0 [shape = 'u32[]', space=smem, size = 0x4, offset = 0x4, fixed_abs, tag = 'smem constant byte address 0x4 - core index']
  #allocation1 [shape = 'u32[72,128]{1,0:T(1,128)}', space=vmem, size = 0x9000, scoped, tag = 'internal scratch']
  %s0 = inlined_call_operand.vmem [shape: f32[64,8], index: 0, kind: input, shape index: {}]
  %s1 = inlined_call_operand.vmem [shape: f32[8,128], index: 1, kind: input, shape index: {}]
  %s2 = inlined_call_operand.vmem [shape: f32[1,128], index: 2, kind: input, shape index: {}]
  %s3 = inlined_call_operand.vmem [shape: f32[128,128], index: 3, kind: input, shape index: {}]
  %s4 = inlined_call_operand.vmem [shape: f32[1,128], index: 4, kind: input, shape index: {}]
  %s5 = inlined_call_operand.vmem [shape: f32[128,128], index: 5, kind: input, shape index: {}]
  %s6 = inlined_call_operand.vmem [shape: f32[1,128], index: 6, kind: input, shape index: {}]
  %s7 = inlined_call_operand.vmem [shape: f32[64,128], index: 7, kind: output, shape index: {}]
  %s8 = sld [smem:[#allocation0]]
  $region61: #{qnetwork_forward.1} parent=0
    _
  %s10 = ssub.s32 1, %s8
  %s11 = scalar_select 0, %s10, %s8
  loop: start=0, step=1, limit=6
  $region2: #{qnetwork_forward.1} parent=0 // loop_pre_header
    _
  $region3: #{qnetwork_forward.1} parent=0 // loop_header
    %s13 = sphi 0, %s17
    %p14 = scmp.ge.s32.totalorder %s13, 6
    %s23 = sphi 0, %s25
    %s26 = sphi 0, %s23
    %s27 = sphi 0, %s26
    %s43 = sphi 0, %s27
    %s47 = sphi 0, %s47
    %s49 = sphi 0, %s47
    %s50 = sphi 0, %s49
    %s64 = sphi 0, %s50
    %s68 = sphi 0, %s68
    %s70 = sphi 0, %s68
    %s71 = sphi 0, %s70
    %s85 = sphi 0, %s71
    %s89 = sphi 0, %s89
    %s91 = sphi 0, %s89
    %s92 = sphi 0, %s91
    %s106 = sphi 0, %s92
    %s110 = sphi 0, %s110
    %s112 = sphi 0, %s110
    %s113 = sphi 0, %s112
    %s127 = sphi 0, %s113
    %s131 = sphi 0, %s131
    %s133 = sphi 0, %s131
    %s134 = sphi 0, %s133
    %s148 = sphi 0, %s134
    %s152 = sphi 0, %s152
    %s154 = sphi 0, %s152
    %s155 = sphi 0, %s154
    %s169 = sphi 0, %s155
    %s175 = sphi 0, %s177
    %s178 = sphi 0, %s175
    %s179 = sphi 0, %s178
    %s195 = sphi 0, %s179
  $region4: #{qnetwork_forward.1} parent=0 // loop_header_branch
    %16 = sbr.rel (%p14) target = $region8
  $region5: #{qnetwork_forward.1} parent=0 // loop_body
    %s18 = ssub.s32 %s13, 1
    %s19 = ssub.s32 %s13, 2
    %s20 = sadd.s32 %s13, 1
    %s21 = ssub.s32 %s13, %s20
    %p22 = scmp.eq.s32.totalorder %s21, 0
    %s24 = sadd.s32 %s23, 1
    %s25 = scalar_select %p22, %s23, %s24
    %p28 = pneg %p22
    %p29 = scmp.eq.s32.totalorder %s13, 3
    %p30 = por %p28, %p29
    %p31 = scmp.ne.s32.totalorder %s23, %s26
    %p32 = scmp.eq.s32.totalorder %s13, 0
    %p33 = por %p31, %p32
    %p34 = scmp.ne.s32.totalorder %s23, %s26
    %p35 = scmp.eq.s32.totalorder %s18, 3
    %p36 = por %p34, %p35
    %p37 = scmp.ne.s32.totalorder %s26, %s27
    %p38 = scmp.eq.s32.totalorder %s18, 0
    %p39 = por %p37, %p38
    %p40 = scmp.ne.s32.totalorder %s26, %s27
    %p41 = scmp.eq.s32.totalorder %s19, 3
    %p42 = por %p40, %p41
    %p44 = scmp.ne.s32.totalorder %s27, %s43
    %p45 = scmp.eq.s32.totalorder %s19, 0
    %p46 = por %p44, %p45
    %s48 = sadd.s32 %s47, 1
    %p51 = scmp.eq.s32.totalorder %s13, 3
    %p52 = scmp.ne.s32.totalorder %s47, %s49
    %p53 = scmp.eq.s32.totalorder %s13, 0
    %p54 = por %p52, %p53
    %p55 = scmp.ne.s32.totalorder %s47, %s49
    %p56 = scmp.eq.s32.totalorder %s18, 3
    %p57 = por %p55, %p56
    %p58 = scmp.ne.s32.totalorder %s49, %s50
    %p59 = scmp.eq.s32.totalorder %s18, 0
    %p60 = por %p58, %p59
    %p61 = scmp.ne.s32.totalorder %s49, %s50
    %p62 = scmp.eq.s32.totalorder %s19, 3
    %p63 = por %p61, %p62
    %p65 = scmp.ne.s32.totalorder %s50, %s64
    %p66 = scmp.eq.s32.totalorder %s19, 0
    %p67 = por %p65, %p66
    %s69 = sadd.s32 %s68, 1
    %p72 = scmp.eq.s32.totalorder %s13, 3
    %p73 = scmp.ne.s32.totalorder %s68, %s70
    %p74 = scmp.eq.s32.totalorder %s13, 0
    %p75 = por %p73, %p74
    %p76 = scmp.ne.s32.totalorder %s68, %s70
    %p77 = scmp.eq.s32.totalorder %s18, 3
    %p78 = por %p76, %p77
    %p79 = scmp.ne.s32.totalorder %s70, %s71
    %p80 = scmp.eq.s32.totalorder %s18, 0
    %p81 = por %p79, %p80
    %p82 = scmp.ne.s32.totalorder %s70, %s71
    %p83 = scmp.eq.s32.totalorder %s19, 3
    %p84 = por %p82, %p83
    %p86 = scmp.ne.s32.totalorder %s71, %s85
    %p87 = scmp.eq.s32.totalorder %s19, 0
    %p88 = por %p86, %p87
    %s90 = sadd.s32 %s89, 1
    %p93 = scmp.eq.s32.totalorder %s13, 3
    %p94 = scmp.ne.s32.totalorder %s89, %s91
    %p95 = scmp.eq.s32.totalorder %s13, 0
    %p96 = por %p94, %p95
    %p97 = scmp.ne.s32.totalorder %s89, %s91
    %p98 = scmp.eq.s32.totalorder %s18, 3
    %p99 = por %p97, %p98
    %p100 = scmp.ne.s32.totalorder %s91, %s92
    %p101 = scmp.eq.s32.totalorder %s18, 0
    %p102 = por %p100, %p101
    %p103 = scmp.ne.s32.totalorder %s91, %s92
    %p104 = scmp.eq.s32.totalorder %s19, 3
    %p105 = por %p103, %p104
    %p107 = scmp.ne.s32.totalorder %s92, %s106
    %p108 = scmp.eq.s32.totalorder %s19, 0
    %p109 = por %p107, %p108
    %s111 = sadd.s32 %s110, 1
    %p114 = scmp.eq.s32.totalorder %s13, 3
    %p115 = scmp.ne.s32.totalorder %s110, %s112
    %p116 = scmp.eq.s32.totalorder %s13, 0
    %p117 = por %p115, %p116
    %p118 = scmp.ne.s32.totalorder %s110, %s112
    %p119 = scmp.eq.s32.totalorder %s18, 3
    %p120 = por %p118, %p119
    %p121 = scmp.ne.s32.totalorder %s112, %s113
    %p122 = scmp.eq.s32.totalorder %s18, 0
    %p123 = por %p121, %p122
    %p124 = scmp.ne.s32.totalorder %s112, %s113
    %p125 = scmp.eq.s32.totalorder %s19, 3
    %p126 = por %p124, %p125
    %p128 = scmp.ne.s32.totalorder %s113, %s127
    %p129 = scmp.eq.s32.totalorder %s19, 0
    %p130 = por %p128, %p129
    %s132 = sadd.s32 %s131, 1
    %p135 = scmp.eq.s32.totalorder %s13, 3
    %p136 = scmp.ne.s32.totalorder %s131, %s133
    %p137 = scmp.eq.s32.totalorder %s13, 0
    %p138 = por %p136, %p137
    %p139 = scmp.ne.s32.totalorder %s131, %s133
    %p140 = scmp.eq.s32.totalorder %s18, 3
    %p141 = por %p139, %p140
    %p142 = scmp.ne.s32.totalorder %s133, %s134
    %p143 = scmp.eq.s32.totalorder %s18, 0
    %p144 = por %p142, %p143
    %p145 = scmp.ne.s32.totalorder %s133, %s134
    %p146 = scmp.eq.s32.totalorder %s19, 3
    %p147 = por %p145, %p146
    %p149 = scmp.ne.s32.totalorder %s134, %s148
    %p150 = scmp.eq.s32.totalorder %s19, 0
    %p151 = por %p149, %p150
    %s153 = sadd.s32 %s152, 1
    %p156 = scmp.eq.s32.totalorder %s13, 3
    %p157 = scmp.ne.s32.totalorder %s152, %s154
    %p158 = scmp.eq.s32.totalorder %s13, 0
    %p159 = por %p157, %p158
    %p160 = scmp.ne.s32.totalorder %s152, %s154
    %p161 = scmp.eq.s32.totalorder %s18, 3
    %p162 = por %p160, %p161
    %p163 = scmp.ne.s32.totalorder %s154, %s155
    %p164 = scmp.eq.s32.totalorder %s18, 0
    %p165 = por %p163, %p164
    %p166 = scmp.ne.s32.totalorder %s154, %s155
    %p167 = scmp.eq.s32.totalorder %s19, 3
    %p168 = por %p166, %p167
    %p170 = scmp.ne.s32.totalorder %s155, %s169
    %p171 = scmp.eq.s32.totalorder %s19, 0
    %p172 = por %p170, %p171
    %s173 = ssub.s32 %s13, %s20
    %p174 = scmp.eq.s32.totalorder %s173, 0
    %s176 = sadd.s32 %s175, 1
    %s177 = scalar_select %p174, %s175, %s176
    %p180 = pneg %p174
    %p181 = scmp.eq.s32.totalorder %s13, 3
    %p182 = por %p180, %p181
    %p183 = scmp.ne.s32.totalorder %s175, %s178
    %p184 = scmp.eq.s32.totalorder %s13, 0
    %p185 = por %p183, %p184
    %p186 = scmp.ne.s32.totalorder %s175, %s178
    %p187 = scmp.eq.s32.totalorder %s18, 3
    %p188 = por %p186, %p187
    %p189 = scmp.ne.s32.totalorder %s178, %s179
    %p190 = scmp.eq.s32.totalorder %s18, 0
    %p191 = por %p189, %p190
    %p192 = scmp.ne.s32.totalorder %s178, %s179
    %p193 = scmp.eq.s32.totalorder %s19, 3
    %p194 = por %p192, %p193
    %p196 = scmp.ne.s32.totalorder %s179, %s195
    %p197 = scmp.eq.s32.totalorder %s19, 0
    %p198 = por %p196, %p197
    %p199 = scmp.le.s32.totalorder 1, %s13
    %p200 = scmp.lt.s32.totalorder %s13, 5
    %p201 = pnand %p199, %p200
    %p202 = pneg %p201
    // Predicated region
    $region9: #{qnetwork_forward.1} parent=5 // pred_check
      _
    $region10: #{qnetwork_forward.1} parent=5 // pred_check_branch
      %204 = sbr.rel (%p201) target = $region12
    $region11: #{qnetwork_forward.1} parent=5 // pred_region
      %s205 = ssub.s32 %s13, 1
      // Predicated region
      $region13: #{qnetwork_forward.1} parent=11 // pred_check
        %p206 = pneg %p60
      $region14: #{qnetwork_forward.1} parent=11 // pred_check_branch
        %208 = sbr.rel (%p206) target = $region16
      $region15: #{qnetwork_forward.1} parent=11 // pred_region
        _
      $region16: #{qnetwork_forward.1} parent=11 // pred_fallthru
        _
      // Predicated region
      $region17: #{qnetwork_forward.1} parent=11 // pred_check
        %p209 = pneg %p81
      $region18: #{qnetwork_forward.1} parent=11 // pred_check_branch
        %211 = sbr.rel (%p209) target = $region20
      $region19: #{qnetwork_forward.1} parent=11 // pred_region
        _
      $region20: #{qnetwork_forward.1} parent=11 // pred_fallthru
        _
      // Predicated region
      $region21: #{qnetwork_forward.1} parent=11 // pred_check
        %p212 = pneg %p102
      $region22: #{qnetwork_forward.1} parent=11 // pred_check_branch
        %214 = sbr.rel (%p212) target = $region24
      $region23: #{qnetwork_forward.1} parent=11 // pred_region
        _
      $region24: #{qnetwork_forward.1} parent=11 // pred_fallthru
        _
      // Predicated region
      $region25: #{qnetwork_forward.1} parent=11 // pred_check
        %p215 = pneg %p123
      $region26: #{qnetwork_forward.1} parent=11 // pred_check_branch
        %217 = sbr.rel (%p215) target = $region28
      $region27: #{qnetwork_forward.1} parent=11 // pred_region
        _
      $region28: #{qnetwork_forward.1} parent=11 // pred_fallthru
        _
      // Predicated region
      $region29: #{qnetwork_forward.1} parent=11 // pred_check
        %p218 = pneg %p144
      $region30: #{qnetwork_forward.1} parent=11 // pred_check_branch
        %220 = sbr.rel (%p218) target = $region32
      $region31: #{qnetwork_forward.1} parent=11 // pred_region
        _
      $region32: #{qnetwork_forward.1} parent=11 // pred_fallthru
        _
      // Predicated region
      $region33: #{qnetwork_forward.1} parent=11 // pred_check
        %p221 = pneg %p165
      $region34: #{qnetwork_forward.1} parent=11 // pred_check_branch
        %223 = sbr.rel (%p221) target = $region36
      $region35: #{qnetwork_forward.1} parent=11 // pred_region
        _
      $region36: #{qnetwork_forward.1} parent=11 // pred_fallthru
        _
    $region12: #{qnetwork_forward.1} parent=5 // pred_fallthru
      _
    %p224 = scmp.lt.s32.totalorder %s13, 4
    // Predicated region
    $region37: #{qnetwork_forward.1} parent=5 // pred_check
      %p225 = pneg %p224
    $region38: #{qnetwork_forward.1} parent=5 // pred_check_branch
      %227 = sbr.rel (%p225) target = $region40
    $region39: #{qnetwork_forward.1} parent=5 // pred_region
      // Predicated region
      $region41: #{qnetwork_forward.1} parent=39 // pred_check
        %p228 = pneg %p33
      $region42: #{qnetwork_forward.1} parent=39 // pred_check_branch
        %230 = sbr.rel (%p228) target = $region44
      $region43: #{qnetwork_forward.1} parent=39 // pred_region
        %s231 = smul.u32 2, %s13
        %p232 = scmp.lt.s32.totalorder %s231, 7
        %s233 = scalar_select %p232, %s231, 7
        %s234 = smul.addr %s233, 8
        %s235 = scalar_lea.vmem %s0, %s234
        %s236 = smul.u32 2, %s13
      $region44: #{qnetwork_forward.1} parent=39 // pred_fallthru
        _
    $region40: #{qnetwork_forward.1} parent=5 // pred_fallthru
      _
    %p237 = scmp.le.s32.totalorder 1, %s13
    %p238 = scmp.lt.s32.totalorder %s13, 5
    %p239 = pnand %p237, %p238
    %p240 = pneg %p239
    // Predicated region
    $region45: #{qnetwork_forward.1} parent=5 // pred_check
      _
    $region46: #{qnetwork_forward.1} parent=5 // pred_check_branch
      %242 = sbr.rel (%p239) target = $region48
    $region47: #{qnetwork_forward.1} parent=5 // pred_region
      %s243 = ssub.s32 %s13, 1
      %s244 = smul.u32 2, %s18
      %p245 = scmp.lt.s32.totalorder %s244, 7
      %s246 = scalar_select %p245, %s244, 7
      %s247 = smul.addr %s246, 8
      %s248 = scalar_lea.vmem %s0, %s247
      %p249 = pneg %p39
      %p250 = pneg %p36
      %p251 = pneg %p60
      %p252 = pneg %p57
      %p253 = pneg %p81
      %p254 = pneg %p78
      %p255 = pneg %p102
      %p256 = pneg %p99
      %p257 = pneg %p123
      %p258 = pneg %p120
      %p259 = pneg %p144
      %p260 = pneg %p141
      %p261 = pneg %p165
      %p262 = pneg %p162
      %p263 = pneg %p191
      %p264 = pneg %p188
      %s265 = smul.u32 2, %s18
      %p266 = scmp.lt.s32.totalorder %s265, 7
      %s267 = scalar_select %p266, %s265, 7
      %s268 = smul.addr %s267, 8
      %s269 = scalar_lea.vmem %s7, %s268
      %s270 = smul.u32 2, %s18
      %p271 = scmp.lt.s32.totalorder %s270, 7
      %s272 = scalar_select %p271, %s270, 7
      %s273 = smul.addr %s272, 8
      %s274 = scalar_lea.vmem %s0, %s273
      %s275 = smul.u32 2, %s18
      %s276 = smul.u32 2, %s18
      %p277 = scmp.lt.s32.totalorder %s276, 7
      %s278 = scalar_select %p277, %s276, 7
      %s279 = smul.addr %s278, 8
      %s280 = scalar_lea.vmem %s7, %s279
      %s281 = smul.u32 2, %s18
      %v282 = vld [vmem:[%s274] sm:$0xff]
      %v283 = vld [vmem:[%s274 + $0x8] sm:$0xff]
      %v284 = vld [vmem:[%s1] sm:$0xff]
      %v285 = vld [vmem:[%s2] sm:$0x1]
      %v287 = vperm.slane %v285, 0
      %vm289 = vcmask 64512
      %v291 = vsel %vm289, %v282, 0
      %v294 = vsel %vm289, %v283, 0
      %296 = vmatpush.msra.mxu0 0.0
      %297 = vmatpush.msra.mxu0 0.0
      %298 = vmatpush.msra.mxu0 0.0
      %299 = vmatpush.msra.mxu0 0.0
      %300 = vmatpush.msra.mxu0 0.0
      %301 = vmatpush.msra.mxu0 0.0
      %302 = vmatpush.msra.mxu0 0.0
      %303 = vmatpush.msra.mxu0 0.0
      %304 = vmatpush.msra.mxu0 0.0
      %305 = vmatpush.msra.mxu0 0.0
      %306 = vmatpush.msra.mxu0 0.0
      %307 = vmatpush.msra.mxu0 0.0
      %308 = vmatpush.msra.mxu0 0.0
      %309 = vmatpush.msra.mxu0 0.0
      %310 = vmatpush.msra.mxu0 0.0
      %311 = vmatpush.msra.mxu0 %v284
      %312 = vmatmul.f32.gmra.mxu0 %v291
      %v313 = vpop.f32.mrf.mxu0
      %v314 = vadd.f32 %v287, %v313
      %315 = vmatmul.f32.gmra.mxu0 %v294
      %v316 = vpop.f32.mrf.mxu0
      %v317 = vadd.f32 %v287, %v316
      %318 = vdwg.mxu0
      %v319 = vmax.f32 %v314, 0.0
      %v320 = vmax.f32 %v317, 0.0
      %v321 = vld [vmem:[%s3] sm:$0xff]
      %v322 = vld [vmem:[%s3 + $0x8] sm:$0xff]
      %v323 = vld [vmem:[%s3 + $0x10] sm:$0xff]
      %v324 = vld [vmem:[%s3 + $0x18] sm:$0xff]
      %v325 = vld [vmem:[%s3 + $0x20] sm:$0xff]
      %v326 = vld [vmem:[%s3 + $0x28] sm:$0xff]
      %v327 = vld [vmem:[%s3 + $0x30] sm:$0xff]
      %v328 = vld [vmem:[%s3 + $0x38] sm:$0xff]
      %v329 = vld [vmem:[%s3 + $0x40] sm:$0xff]
      %v330 = vld [vmem:[%s3 + $0x48] sm:$0xff]
      %v331 = vld [vmem:[%s3 + $0x50] sm:$0xff]
      %v332 = vld [vmem:[%s3 + $0x58] sm:$0xff]
      %v333 = vld [vmem:[%s3 + $0x60] sm:$0xff]
      %v334 = vld [vmem:[%s3 + $0x68] sm:$0xff]
      %v335 = vld [vmem:[%s3 + $0x70] sm:$0xff]
      %v336 = vld [vmem:[%s3 + $0x78] sm:$0xff]
      %v337 = vld [vmem:[%s4] sm:$0x1]
      %v339 = vperm.slane %v337, 0
      %341 = vmatpush.msra.mxu0 %v336
      %342 = vmatpush.msra.mxu0 %v335
      %343 = vmatpush.msra.mxu0 %v334
      %344 = vmatpush.msra.mxu0 %v333
      %345 = vmatpush.msra.mxu0 %v332
      %346 = vmatpush.msra.mxu0 %v331
      %347 = vmatpush.msra.mxu0 %v330
      %348 = vmatpush.msra.mxu0 %v329
      %349 = vmatpush.msra.mxu0 %v328
      %350 = vmatpush.msra.mxu0 %v327
      %351 = vmatpush.msra.mxu0 %v326
      %352 = vmatpush.msra.mxu0 %v325
      %353 = vmatpush.msra.mxu0 %v324
      %354 = vmatpush.msra.mxu0 %v323
      %355 = vmatpush.msra.mxu0 %v322
      %356 = vmatpush.msra.mxu0 %v321
      %357 = vmatmul.f32.gmra.mxu0 %v319
      %v358 = vpop.f32.mrf.mxu0
      %v359 = vadd.f32 %v339, %v358
      %360 = vmatmul.f32.gmra.mxu0 %v320
      %v361 = vpop.f32.mrf.mxu0
      %v362 = vadd.f32 %v339, %v361
      %363 = vdwg.mxu0
      %v364 = vmax.f32 %v359, 0.0
      %v365 = vmax.f32 %v362, 0.0
      %v366 = vld [vmem:[%s5] sm:$0xff]
      %v367 = vld [vmem:[%s5 + $0x8] sm:$0xff]
      %v368 = vld [vmem:[%s5 + $0x10] sm:$0xff]
      %v369 = vld [vmem:[%s5 + $0x18] sm:$0xff]
      %v370 = vld [vmem:[%s5 + $0x20] sm:$0xff]
      %v371 = vld [vmem:[%s5 + $0x28] sm:$0xff]
      %v372 = vld [vmem:[%s5 + $0x30] sm:$0xff]
      %v373 = vld [vmem:[%s5 + $0x38] sm:$0xff]
      %v374 = vld [vmem:[%s5 + $0x40] sm:$0xff]
      %v375 = vld [vmem:[%s5 + $0x48] sm:$0xff]
      %v376 = vld [vmem:[%s5 + $0x50] sm:$0xff]
      %v377 = vld [vmem:[%s5 + $0x58] sm:$0xff]
      %v378 = vld [vmem:[%s5 + $0x60] sm:$0xff]
      %v379 = vld [vmem:[%s5 + $0x68] sm:$0xff]
      %v380 = vld [vmem:[%s5 + $0x70] sm:$0xff]
      %v381 = vld [vmem:[%s5 + $0x78] sm:$0xff]
      %v382 = vld [vmem:[%s6] sm:$0x1]
      %v384 = vperm.slane %v382, 0
      %386 = vmatpush.msra.mxu0 %v381
      %387 = vmatpush.msra.mxu0 %v380
      %388 = vmatpush.msra.mxu0 %v379
      %389 = vmatpush.msra.mxu0 %v378
      %390 = vmatpush.msra.mxu0 %v377
      %391 = vmatpush.msra.mxu0 %v376
      %392 = vmatpush.msra.mxu0 %v375
      %393 = vmatpush.msra.mxu0 %v374
      %394 = vmatpush.msra.mxu0 %v373
      %395 = vmatpush.msra.mxu0 %v372
      %396 = vmatpush.msra.mxu0 %v371
      %397 = vmatpush.msra.mxu0 %v370
      %398 = vmatpush.msra.mxu0 %v369
      %399 = vmatpush.msra.mxu0 %v368
      %400 = vmatpush.msra.mxu0 %v367
      %401 = vmatpush.msra.mxu0 %v366
      %402 = vmatmul.f32.gmra.mxu0 %v364
      %v403 = vpop.f32.mrf.mxu0
      %v404 = vadd.f32 %v384, %v403
      %405 = vmatmul.f32.gmra.mxu0 %v365
      %v406 = vpop.f32.mrf.mxu0
      %v407 = vadd.f32 %v384, %v406
      %408 = vdwg.mxu0
      %409 = vst [vmem:[%s280] sm:$0xff] %v404
      %410 = vst [vmem:[%s280 + $0x8] sm:$0xff] %v407
      %s411 = smul.u32 2, %s18
      %p412 = scmp.lt.s32.totalorder %s411, 7
      %s413 = scalar_select %p412, %s411, 7
      %s414 = smul.addr %s413, 8
      %s415 = scalar_lea.vmem %s7, %s414
      // Predicated region
      $region49: #{qnetwork_forward.1} parent=47 // pred_check
        %p416 = pneg %p188
      $region50: #{qnetwork_forward.1} parent=47 // pred_check_branch
        %418 = sbr.rel (%p416) target = $region52
      $region51: #{qnetwork_forward.1} parent=47 // pred_region
        %s419 = smul.u32 2, %s18
      $region52: #{qnetwork_forward.1} parent=47 // pred_fallthru
        _
    $region48: #{qnetwork_forward.1} parent=5 // pred_fallthru
      _
    %p420 = scmp.le.s32.totalorder 2, %s13
    // Predicated region
    $region53: #{qnetwork_forward.1} parent=5 // pred_check
      %p421 = pneg %p420
    $region54: #{qnetwork_forward.1} parent=5 // pred_check_branch
      %423 = sbr.rel (%p421) target = $region56
    $region55: #{qnetwork_forward.1} parent=5 // pred_region
      %s424 = ssub.s32 %s13, 2
      // Predicated region
      $region57: #{qnetwork_forward.1} parent=55 // pred_check
        %p425 = pneg %p194
      $region58: #{qnetwork_forward.1} parent=55 // pred_check_branch
        %427 = sbr.rel (%p425) target = $region60
      $region59: #{qnetwork_forward.1} parent=55 // pred_region
        %s428 = smul.u32 2, %s19
        %p429 = scmp.lt.s32.totalorder %s428, 7
        %s430 = scalar_select %p429, %s428, 7
        %s431 = smul.addr %s430, 8
        %s432 = scalar_lea.vmem %s7, %s431
      $region60: #{qnetwork_forward.1} parent=55 // pred_fallthru
        _
    $region56: #{qnetwork_forward.1} parent=5 // pred_fallthru
      _
  $region6: #{qnetwork_forward.1} parent=0 // loop_footer
    %s17 = sadd.s32 1, %s13
  $region7: #{qnetwork_forward.1} parent=0 // loop_footer_branch
    %12 = sbr.rel target = $region3
  $region8: #{qnetwork_forward.1} parent=0 // loop_exit
    _

</llo_original>
